<compile_context>
chip_gen: v7x
topology: tpu7x:2x2x1
jax: 0.10.0
libtpu: 0.0.40
codegen_flags: <defaults>
</compile_context>

<pallas_src>
import jax
import jax.numpy as jnp
from jax.experimental import pallas as pl
from jax.experimental.pallas import tpu as pltpu

_EPS = 1e-5   # nn.BatchNorm2d default eps
_TM = 256     # pixel (lane-axis) tile; multiple of 128. Enlarge for big shapes.


# ------------------------------ Pallas kernels ------------------------------

def conv_stats_kernel(w_ref, taps_ref, conv_ref, sum_ref, sq_ref):
    """Folded 3x3-conv matmul for one pixel tile + BN sum/sumsq accumulation.

    w_ref    : (Cout, 9*Cin) bf16   (same block every grid step)
    taps_ref : (9*Cin, TM)   bf16   (lane-dense pixel tile)
    conv_ref : (Cout, TM)    f32    conv output tile
    sum_ref  : (Cout, 1)     f32    running per-channel sum   (revisited -> "arbitrary")
    sq_ref   : (Cout, 1)     f32    running per-channel sumsq (revisited -> "arbitrary")
    """
    acc = jnp.dot(w_ref[...], taps_ref[...], preferred_element_type=jnp.float32)

    @pl.when(pl.program_id(0) == 0)
    def _():
        sum_ref[...] = jnp.zeros_like(sum_ref)
        sq_ref[...] = jnp.zeros_like(sq_ref)

    sum_ref[...] += jnp.sum(acc, axis=1, keepdims=True)
    sq_ref[...] += jnp.sum(acc * acc, axis=1, keepdims=True)
    conv_ref[...] = acc


def bn_relu_kernel(conv_ref, scale_ref, shift_ref, out_ref):
    """out = relu(conv * scale + shift) for one lane-dense pixel tile."""
    y = conv_ref[...] * scale_ref[...] + shift_ref[...]
    out_ref[...] = jnp.maximum(y, 0.0).astype(out_ref.dtype)


def bn_add_relu_kernel(conv_ref, scale_ref, shift_ref, res_ref, out_ref):
    """out = relu(conv * scale + shift + residual) for one lane-dense pixel tile."""
    y = conv_ref[...] * scale_ref[...] + shift_ref[...] + res_ref[...]
    out_ref[...] = jnp.maximum(y, 0.0).astype(out_ref.dtype)


# ------------------------------ JAX glue code ------------------------------

def _fold_weight(w_oihw):
    """(Cout, Cin, 3, 3) -> (Cout, 9*Cin); column index = (dy*3 + dx)*Cin + ci."""
    cout, cin = w_oihw.shape[0], w_oihw.shape[1]
    return jnp.transpose(w_oihw, (0, 2, 3, 1)).reshape(cout, 9 * cin)


def _im2col_taps(x_cnhw):
    """(C, N, H, W) -> (9*C, N*H*W) shifted taps for a 3x3 / stride-1 / pad-1 conv.

    Row index = (dy*3 + dx)*C + c, matching _fold_weight's column order.
    """
    c, n, h, w = x_cnhw.shape
    xp = jnp.pad(x_cnhw, ((0, 0), (0, 0), (1, 1), (1, 1)))
    taps = [xp[:, :, dy:dy + h, dx:dx + w].reshape(c, n * h * w)
            for dy in range(3) for dx in range(3)]
    return jnp.concatenate(taps, axis=0)


def _conv_bn_stage(taps, w2d, gamma, beta, residual, out_dtype, tm):
    """conv3x3 -> train-mode BN [-> +residual] -> ReLU, in lane-dense (C, M) layout."""
    k, m = taps.shape
    cout = w2d.shape[0]
    tm = tm if m % tm == 0 else m          # fall back to a single tile
    grid = (m // tm,)

    # Pass 1: conv tiles + global per-channel sum / sum-of-squares.
    conv_out, s1, s2 = pl.pallas_call(
        conv_stats_kernel,
        out_shape=(jax.ShapeDtypeStruct((cout, m), jnp.float32),
                   jax.ShapeDtypeStruct((cout, 1), jnp.float32),
                   jax.ShapeDtypeStruct((cout, 1), jnp.float32)),
        grid=grid,
        in_specs=[pl.BlockSpec((cout, k), lambda i: (0, 0)),
                  pl.BlockSpec((k, tm), lambda i: (0, i))],
        out_specs=(pl.BlockSpec((cout, tm), lambda i: (0, i)),
                   pl.BlockSpec((cout, 1), lambda i: (0, 0)),
                   pl.BlockSpec((cout, 1), lambda i: (0, 0))),
        compiler_params=pltpu.CompilerParams(
            dimension_semantics=("arbitrary",)),      # stats blocks are revisited
    )(w2d, taps)

    # Fold batch stats + gamma/beta into per-channel scale/shift once (tiny, hoisted).
    mean = s1 / m
    var = s2 / m - mean * mean                        # biased variance (PyTorch train BN)
    scale = gamma.reshape(cout, 1) * jax.lax.rsqrt(var + _EPS)
    shift = beta.reshape(cout, 1) - mean * scale

    # Pass 2: BN affine (+ residual) + ReLU; independent tiles -> "parallel".
    if residual is None:
        kernel, args = bn_relu_kernel, (conv_out, scale, shift)
        extra_specs = []
    else:
        kernel, args = bn_add_relu_kernel, (conv_out, scale, shift, residual)
        extra_specs = [pl.BlockSpec((cout, tm), lambda i: (0, i))]

    return pl.pallas_call(
        kernel,
        out_shape=jax.ShapeDtypeStruct((cout, m), out_dtype),
        grid=grid,
        in_specs=[pl.BlockSpec((cout, tm), lambda i: (0, i)),
                  pl.BlockSpec((cout, 1), lambda i: (0, 0)),
                  pl.BlockSpec((cout, 1), lambda i: (0, 0))] + extra_specs,
        out_specs=pl.BlockSpec((cout, tm), lambda i: (0, i)),
        compiler_params=pltpu.CompilerParams(
            dimension_semantics=("parallel",)),
    )(*args)


def residual_block(x_nchw, params, *, tm=_TM):
    """Pallas version of ResidualBlock.forward (stride=1, shortcut=None)."""
    n, c, h, w = x_nchw.shape
    m = n * h * w
    x_cm = jnp.transpose(x_nchw, (1, 0, 2, 3)).reshape(c, m)        # residual, (C, M)

    # Stage 1: conv1 -> BN1 -> ReLU  (bf16 MXU operands, f32 accumulation / BN math)
    taps1 = _im2col_taps(x_cm.reshape(c, n, h, w)).astype(jnp.bfloat16)
    w1 = _fold_weight(params["w1"]).astype(jnp.bfloat16)
    y1 = _conv_bn_stage(taps1, w1, params["g1"], params["b1"],
                        residual=None, out_dtype=jnp.bfloat16, tm=tm)

    # Stage 2: conv2 -> BN2 -> +x -> ReLU
    taps2 = _im2col_taps(y1.reshape(c, n, h, w))                    # already bf16
    w2 = _fold_weight(params["w2"]).astype(jnp.bfloat16)
    y2 = _conv_bn_stage(taps2, w2, params["g2"], params["b2"],
                        residual=x_cm, out_dtype=jnp.float32, tm=tm)

    return jnp.transpose(y2.reshape(c, n, h, w), (1, 0, 2, 3))      # back to NCHW


# --------------------------- pure-JAX reference ----------------------------

def residual_block_reference(x, p):
    def conv(z, wgt):
        return jax.lax.conv_general_dilated(
            z, wgt, window_strides=(1, 1), padding=((1, 1), (1, 1)),
            dimension_numbers=("NCHW", "OIHW", "NCHW"))

    def bn(z, g, b):
        mean = jnp.mean(z, axis=(0, 2, 3), keepdims=True)
        var = jnp.mean((z - mean) ** 2, axis=(0, 2, 3), keepdims=True)
        return ((z - mean) * jax.lax.rsqrt(var + _EPS) * g[None, :, None, None]
                + b[None, :, None, None])

    y = jax.nn.relu(bn(conv(x, p["w1"]), p["g1"], p["b1"]))
    y = bn(conv(y, p["w2"]), p["g2"], p["b2"])
    return jax.nn.relu(y + x)


# ---------------------------------- main -----------------------------------

if __name__ == "__main__":
    key = jax.random.PRNGKey(0)
    N, C, H, W = 2, 8, 16, 16   # inchannel == outchannel, stride=1 -> identity shortcut
    ks = jax.random.split(key, 7)

    x = jax.random.normal(ks[0], (N, C, H, W), jnp.float32)
    params = {
        "w1": 0.1 * jax.random.normal(ks[1], (C, C, 3, 3), jnp.float32),
        "g1": 1.0 + 0.1 * jax.random.normal(ks[2], (C,), jnp.float32),
        "b1": 0.1 * jax.random.normal(ks[3], (C,), jnp.float32),
        "w2": 0.1 * jax.random.normal(ks[4], (C, C, 3, 3), jnp.float32),
        "g2": 1.0 + 0.1 * jax.random.normal(ks[5], (C,), jnp.float32),
        "b2": 0.1 * jax.random.normal(ks[6], (C,), jnp.float32),
    }

    out = jax.block_until_ready(jax.jit(residual_block)(x, params))
    ref = residual_block_reference(x, params)

    assert out.shape == (N, C, H, W), out.shape
    # bf16 MXU operands through two conv+BN layers -> loosened tolerance.
    if not jnp.allclose(out, ref, atol=5e-2, rtol=5e-2):
        max_err = float(jnp.max(jnp.abs(out - ref)))
        raise AssertionError(f"Pallas output mismatch vs reference, max err={max_err}")

    print("KERNEL_OK")
</pallas_src>

<mosaic_0001>
module attributes {stable_mosaic.version = 11 : i64} {
  func.func @conv_stats_kernel(%arg0: i32, %arg1: memref<8x72xbf16, #tpu.memory_space<vmem>>, %arg2: memref<72x256xbf16, #tpu.memory_space<vmem>>, %arg3: memref<8x256xf32, #tpu.memory_space<vmem>>, %arg4: memref<8x1xf32, #tpu.memory_space<vmem>>, %arg5: memref<8x1xf32, #tpu.memory_space<vmem>>) attributes {dimension_semantics = [#tpu.dimension_semantics<arbitrary>], iteration_bounds = array<i64: 2>, scalar_prefetch = 0 : i64, scratch_operands = 0 : i64, tpu.core_type = #tpu.core_type<tc>, window_params = [{pipeline_mode = #tpu.pipeline_mode<synchronous>, transform_indices = @transform_0, window_bounds = array<i64: 8, 72>}, {transform_indices = @transform_1, window_bounds = array<i64: 72, 256>}, {transform_indices = @transform_2, window_bounds = array<i64: 8, 256>}, {pipeline_mode = #tpu.pipeline_mode<synchronous>, transform_indices = @transform_3, window_bounds = array<i64: 8, 1>}, {pipeline_mode = #tpu.pipeline_mode<synchronous>, transform_indices = @transform_4, window_bounds = array<i64: 8, 1>}]} {
    %c0 = arith.constant 0 : index
    %c0_0 = arith.constant 0 : index
    %0 = vector.load %arg1[%c0, %c0_0] : memref<8x72xbf16, #tpu.memory_space<vmem>>, vector<8x72xbf16>
    %c0_1 = arith.constant 0 : index
    %c0_2 = arith.constant 0 : index
    %1 = vector.load %arg2[%c0_1, %c0_2] : memref<72x256xbf16, #tpu.memory_space<vmem>>, vector<72x256xbf16>
    %cst = arith.constant dense<0.000000e+00> : vector<8x256xf32>
    %2 = tpu.matmul %0, %1, %cst {dimension_numbers = #tpu.dot_dimension_numbers<[1], [0], [0], [1], [0, 0, 1, 1], [], []>} : vector<8x72xbf16>, vector<72x256xbf16>, vector<8x256xf32> -> vector<8x256xf32>
    %c0_i32 = arith.constant 0 : i32
    %3 = arith.cmpi eq, %arg0, %c0_i32 : i32
    %4 = arith.extui %3 : i1 to i32
    %c0_i32_3 = arith.constant 0 : i32
    %5 = arith.cmpi ne, %4, %c0_i32_3 : i32
    scf.if %5 {
      %cst_16 = arith.constant 0.000000e+00 : f32
      %18 = vector.broadcast %cst_16 : f32 to vector<8x1xf32>
      %c0_17 = arith.constant 0 : index
      %c0_18 = arith.constant 0 : index
      %19 = vector.load %arg4[%c0_17, %c0_18] : memref<8x1xf32, #tpu.memory_space<vmem>>, vector<8x1xf32>
      tpu.vector_store %arg4[%c0_17, %c0_18], %18 {strides = array<i32>} : memref<8x1xf32, #tpu.memory_space<vmem>>, vector<8x1xf32>,
      %cst_19 = arith.constant 0.000000e+00 : f32
      %20 = vector.broadcast %cst_19 : f32 to vector<8x1xf32>
      %c0_20 = arith.constant 0 : index
      %c0_21 = arith.constant 0 : index
      %21 = vector.load %arg5[%c0_20, %c0_21] : memref<8x1xf32, #tpu.memory_space<vmem>>, vector<8x1xf32>
      tpu.vector_store %arg5[%c0_20, %c0_21], %20 {strides = array<i32>} : memref<8x1xf32, #tpu.memory_space<vmem>>, vector<8x1xf32>,
    } else {
    }
    %c0_4 = arith.constant 0 : index
    %c0_5 = arith.constant 0 : index
    %6 = vector.load %arg4[%c0_4, %c0_5] : memref<8x1xf32, #tpu.memory_space<vmem>>, vector<8x1xf32>
    %cst_6 = arith.constant dense<0.000000e+00> : vector<8xf32>
    %7 = vector.multi_reduction <add>, %2, %cst_6 [1] : vector<8x256xf32> to vector<8xf32>
    %8 = vector.shape_cast %7 : vector<8xf32> to vector<8x1xf32>
    %9 = arith.addf %6, %8 : vector<8x1xf32>
    %c0_7 = arith.constant 0 : index
    %c0_8 = arith.constant 0 : index
    %10 = vector.load %arg4[%c0_7, %c0_8] : memref<8x1xf32, #tpu.memory_space<vmem>>, vector<8x1xf32>
    tpu.vector_store %arg4[%c0_7, %c0_8], %9 {strides = array<i32>} : memref<8x1xf32, #tpu.memory_space<vmem>>, vector<8x1xf32>,
    %c0_9 = arith.constant 0 : index
    %c0_10 = arith.constant 0 : index
    %11 = vector.load %arg5[%c0_9, %c0_10] : memref<8x1xf32, #tpu.memory_space<vmem>>, vector<8x1xf32>
    %12 = arith.mulf %2, %2 : vector<8x256xf32>
    %cst_11 = arith.constant dense<0.000000e+00> : vector<8xf32>
    %13 = vector.multi_reduction <add>, %12, %cst_11 [1] : vector<8x256xf32> to vector<8xf32>
    %14 = vector.shape_cast %13 : vector<8xf32> to vector<8x1xf32>
    %15 = arith.addf %11, %14 : vector<8x1xf32>
    %c0_12 = arith.constant 0 : index
    %c0_13 = arith.constant 0 : index
    %16 = vector.load %arg5[%c0_12, %c0_13] : memref<8x1xf32, #tpu.memory_space<vmem>>, vector<8x1xf32>
    tpu.vector_store %arg5[%c0_12, %c0_13], %15 {strides = array<i32>} : memref<8x1xf32, #tpu.memory_space<vmem>>, vector<8x1xf32>,
    %c0_14 = arith.constant 0 : index
    %c0_15 = arith.constant 0 : index
    %17 = vector.load %arg3[%c0_14, %c0_15] : memref<8x256xf32, #tpu.memory_space<vmem>>, vector<8x256xf32>
    tpu.vector_store %arg3[%c0_14, %c0_15], %2 {strides = array<i32>} : memref<8x256xf32, #tpu.memory_space<vmem>>, vector<8x256xf32>,
    return
  }
  func.func @transform_0(%arg0: i32) -> (i32, i32) {
    %c0_i32 = arith.constant 0 : i32
    %c0_i32_0 = arith.constant 0 : i32
    %c0_i32_1 = arith.constant 0 : i32
    return %c0_i32, %c0_i32_0 : i32, i32
  }
  func.func @transform_1(%arg0: i32) -> (i32, i32) {
    %c0_i32 = arith.constant 0 : i32
    %c0_i32_0 = arith.constant 0 : i32
    return %c0_i32, %arg0 : i32, i32
  }
  func.func @transform_2(%arg0: i32) -> (i32, i32) {
    %c0_i32 = arith.constant 0 : i32
    %c0_i32_0 = arith.constant 0 : i32
    return %c0_i32, %arg0 : i32, i32
  }
  func.func @transform_3(%arg0: i32) -> (i32, i32) {
    %c0_i32 = arith.constant 0 : i32
    %c0_i32_0 = arith.constant 0 : i32
    %c0_i32_1 = arith.constant 0 : i32
    return %c0_i32, %c0_i32_0 : i32, i32
  }
  func.func @transform_4(%arg0: i32) -> (i32, i32) {
    %c0_i32 = arith.constant 0 : i32
    %c0_i32_0 = arith.constant 0 : i32
    %c0_i32_1 = arith.constant 0 : i32
    return %c0_i32, %c0_i32_0 : i32, i32
  }
}

module attributes {stable_mosaic.version = 11 : i64} {
  func.func @bn_relu_kernel(%arg0: i32, %arg1: memref<8x256xf32, #tpu.memory_space<vmem>>, %arg2: memref<8x1xf32, #tpu.memory_space<vmem>>, %arg3: memref<8x1xf32, #tpu.memory_space<vmem>>, %arg4: memref<8x256xbf16, #tpu.memory_space<vmem>>) attributes {dimension_semantics = [#tpu.dimension_semantics<parallel>], iteration_bounds = array<i64: 2>, scalar_prefetch = 0 : i64, scratch_operands = 0 : i64, tpu.core_type = #tpu.core_type<tc>, window_params = [{transform_indices = @transform_0, window_bounds = array<i64: 8, 256>}, {pipeline_mode = #tpu.pipeline_mode<synchronous>, transform_indices = @transform_1, window_bounds = array<i64: 8, 1>}, {pipeline_mode = #tpu.pipeline_mode<synchronous>, transform_indices = @transform_2, window_bounds = array<i64: 8, 1>}, {transform_indices = @transform_3, window_bounds = array<i64: 8, 256>}]} {
    %c0 = arith.constant 0 : index
    %c0_0 = arith.constant 0 : index
    %0 = vector.load %arg1[%c0, %c0_0] : memref<8x256xf32, #tpu.memory_space<vmem>>, vector<8x256xf32>
    %c0_1 = arith.constant 0 : index
    %c0_2 = arith.constant 0 : index
    %1 = vector.load %arg2[%c0_1, %c0_2] : memref<8x1xf32, #tpu.memory_space<vmem>>, vector<8x1xf32>
    %2 = vector.broadcast %1 : vector<8x1xf32> to vector<8x256xf32>
    %3 = arith.mulf %0, %2 : vector<8x256xf32>
    %c0_3 = arith.constant 0 : index
    %c0_4 = arith.constant 0 : index
    %4 = vector.load %arg3[%c0_3, %c0_4] : memref<8x1xf32, #tpu.memory_space<vmem>>, vector<8x1xf32>
    %5 = vector.broadcast %4 : vector<8x1xf32> to vector<8x256xf32>
    %6 = arith.addf %3, %5 : vector<8x256xf32>
    %cst = arith.constant 0.000000e+00 : f32
    %7 = vector.broadcast %cst : f32 to vector<8x256xf32>
    %8 = arith.maximumf %6, %7 : vector<8x256xf32>
    %9 = arith.truncf %8 : vector<8x256xf32> to vector<8x256xbf16>
    %c0_5 = arith.constant 0 : index
    %c0_6 = arith.constant 0 : index
    %10 = vector.load %arg4[%c0_5, %c0_6] : memref<8x256xbf16, #tpu.memory_space<vmem>>, vector<8x256xbf16>
    tpu.vector_store %arg4[%c0_5, %c0_6], %9 {strides = array<i32>} : memref<8x256xbf16, #tpu.memory_space<vmem>>, vector<8x256xbf16>,
    return
  }
  func.func @transform_0(%arg0: i32) -> (i32, i32) {
    %c0_i32 = arith.constant 0 : i32
    %c0_i32_0 = arith.constant 0 : i32
    return %c0_i32, %arg0 : i32, i32
  }
  func.func @transform_1(%arg0: i32) -> (i32, i32) {
    %c0_i32 = arith.constant 0 : i32
    %c0_i32_0 = arith.constant 0 : i32
    %c0_i32_1 = arith.constant 0 : i32
    return %c0_i32, %c0_i32_0 : i32, i32
  }
  func.func @transform_2(%arg0: i32) -> (i32, i32) {
    %c0_i32 = arith.constant 0 : i32
    %c0_i32_0 = arith.constant 0 : i32
    %c0_i32_1 = arith.constant 0 : i32
    return %c0_i32, %c0_i32_0 : i32, i32
  }
  func.func @transform_3(%arg0: i32) -> (i32, i32) {
    %c0_i32 = arith.constant 0 : i32
    %c0_i32_0 = arith.constant 0 : i32
    return %c0_i32, %arg0 : i32, i32
  }
}

module attributes {stable_mosaic.version = 11 : i64} {
  func.func @bn_add_relu_kernel(%arg0: i32, %arg1: memref<8x256xf32, #tpu.memory_space<vmem>>, %arg2: memref<8x1xf32, #tpu.memory_space<vmem>>, %arg3: memref<8x1xf32, #tpu.memory_space<vmem>>, %arg4: memref<8x256xf32, #tpu.memory_space<vmem>>, %arg5: memref<8x256xf32, #tpu.memory_space<vmem>>) attributes {dimension_semantics = [#tpu.dimension_semantics<parallel>], iteration_bounds = array<i64: 2>, scalar_prefetch = 0 : i64, scratch_operands = 0 : i64, tpu.core_type = #tpu.core_type<tc>, window_params = [{transform_indices = @transform_0, window_bounds = array<i64: 8, 256>}, {pipeline_mode = #tpu.pipeline_mode<synchronous>, transform_indices = @transform_1, window_bounds = array<i64: 8, 1>}, {pipeline_mode = #tpu.pipeline_mode<synchronous>, transform_indices = @transform_2, window_bounds = array<i64: 8, 1>}, {transform_indices = @transform_3, window_bounds = array<i64: 8, 256>}, {transform_indices = @transform_4, window_bounds = array<i64: 8, 256>}]} {
    %c0 = arith.constant 0 : index
    %c0_0 = arith.constant 0 : index
    %0 = vector.load %arg1[%c0, %c0_0] : memref<8x256xf32, #tpu.memory_space<vmem>>, vector<8x256xf32>
    %c0_1 = arith.constant 0 : index
    %c0_2 = arith.constant 0 : index
    %1 = vector.load %arg2[%c0_1, %c0_2] : memref<8x1xf32, #tpu.memory_space<vmem>>, vector<8x1xf32>
    %2 = vector.broadcast %1 : vector<8x1xf32> to vector<8x256xf32>
    %3 = arith.mulf %0, %2 : vector<8x256xf32>
    %c0_3 = arith.constant 0 : index
    %c0_4 = arith.constant 0 : index
    %4 = vector.load %arg3[%c0_3, %c0_4] : memref<8x1xf32, #tpu.memory_space<vmem>>, vector<8x1xf32>
    %5 = vector.broadcast %4 : vector<8x1xf32> to vector<8x256xf32>
    %6 = arith.addf %3, %5 : vector<8x256xf32>
    %c0_5 = arith.constant 0 : index
    %c0_6 = arith.constant 0 : index
    %7 = vector.load %arg4[%c0_5, %c0_6] : memref<8x256xf32, #tpu.memory_space<vmem>>, vector<8x256xf32>
    %8 = arith.addf %6, %7 : vector<8x256xf32>
    %cst = arith.constant 0.000000e+00 : f32
    %9 = vector.broadcast %cst : f32 to vector<8x256xf32>
    %10 = arith.maximumf %8, %9 : vector<8x256xf32>
    %c0_7 = arith.constant 0 : index
    %c0_8 = arith.constant 0 : index
    %11 = vector.load %arg5[%c0_7, %c0_8] : memref<8x256xf32, #tpu.memory_space<vmem>>, vector<8x256xf32>
    tpu.vector_store %arg5[%c0_7, %c0_8], %10 {strides = array<i32>} : memref<8x256xf32, #tpu.memory_space<vmem>>, vector<8x256xf32>,
    return
  }
  func.func @transform_0(%arg0: i32) -> (i32, i32) {
    %c0_i32 = arith.constant 0 : i32
    %c0_i32_0 = arith.constant 0 : i32
    return %c0_i32, %arg0 : i32, i32
  }
  func.func @transform_1(%arg0: i32) -> (i32, i32) {
    %c0_i32 = arith.constant 0 : i32
    %c0_i32_0 = arith.constant 0 : i32
    %c0_i32_1 = arith.constant 0 : i32
    return %c0_i32, %c0_i32_0 : i32, i32
  }
  func.func @transform_2(%arg0: i32) -> (i32, i32) {
    %c0_i32 = arith.constant 0 : i32
    %c0_i32_0 = arith.constant 0 : i32
    %c0_i32_1 = arith.constant 0 : i32
    return %c0_i32, %c0_i32_0 : i32, i32
  }
  func.func @transform_3(%arg0: i32) -> (i32, i32) {
    %c0_i32 = arith.constant 0 : i32
    %c0_i32_0 = arith.constant 0 : i32
    return %c0_i32, %arg0 : i32, i32
  }
  func.func @transform_4(%arg0: i32) -> (i32, i32) {
    %c0_i32 = arith.constant 0 : i32
    %c0_i32_0 = arith.constant 0 : i32
    return %c0_i32, %arg0 : i32, i32
  }
}

</mosaic_0001>

<llo_original>
// kernel: residual_block.5
$region0: #{residual_block.5}
  #allocation0 [shape = 'u32[]', space=smem, size = 0x4, offset = 0x4, fixed_abs, tag = 'smem constant byte address 0x4 - core index']
  #allocation1 [shape = 'u32[144,128]{1,0:T(1,128)}', space=vmem, size = 0x12000, scoped, tag = 'internal scratch']
  %s0 = inlined_call_operand.vmem [shape: f32[8,512], index: 0, kind: input, shape index: {}]
  %s1 = inlined_call_operand.vmem [shape: f32[8,1], index: 1, kind: input, shape index: {}]
  %s2 = inlined_call_operand.vmem [shape: f32[8,1], index: 2, kind: input, shape index: {}]
  %s3 = inlined_call_operand.vmem [shape: bf16[8,512], index: 3, kind: output, shape index: {}]
  %s4 = sld [smem:[#allocation0]]
  $region45: #{residual_block.5} parent=0
    _
  %s6 = ssub.s32 1, %s4
  %s7 = scalar_select 0, %s6, %s4
  loop: start=0, step=1, limit=4
  $region2: #{residual_block.5} parent=0 // loop_pre_header
    _
  $region3: #{residual_block.5} parent=0 // loop_header
    %s9 = sphi 0, %s13
    %p10 = scmp.ge.s32.totalorder %s9, 4
    %s19 = sphi 0, %s21
    %s22 = sphi 0, %s19
    %s23 = sphi 0, %s22
    %s39 = sphi 0, %s23
    %s43 = sphi 0, %s43
    %s45 = sphi 0, %s43
    %s46 = sphi 0, %s45
    %s60 = sphi 0, %s46
    %s64 = sphi 0, %s64
    %s66 = sphi 0, %s64
    %s67 = sphi 0, %s66
    %s81 = sphi 0, %s67
    %s87 = sphi 0, %s89
    %s90 = sphi 0, %s87
    %s91 = sphi 0, %s90
    %s107 = sphi 0, %s91
  $region4: #{residual_block.5} parent=0 // loop_header_branch
    %12 = sbr.rel (%p10) target = $region8
  $region5: #{residual_block.5} parent=0 // loop_body
    %s14 = ssub.s32 %s9, 1
    %s15 = ssub.s32 %s9, 2
    %s16 = sadd.s32 %s9, 1
    %s17 = ssub.s32 %s9, %s16
    %p18 = scmp.eq.s32.totalorder %s17, 0
    %s20 = sadd.s32 %s19, 1
    %s21 = scalar_select %p18, %s19, %s20
    %p24 = pneg %p18
    %p25 = scmp.eq.s32.totalorder %s9, 1
    %p26 = por %p24, %p25
    %p27 = scmp.ne.s32.totalorder %s19, %s22
    %p28 = scmp.eq.s32.totalorder %s9, 0
    %p29 = por %p27, %p28
    %p30 = scmp.ne.s32.totalorder %s19, %s22
    %p31 = scmp.eq.s32.totalorder %s14, 1
    %p32 = por %p30, %p31
    %p33 = scmp.ne.s32.totalorder %s22, %s23
    %p34 = scmp.eq.s32.totalorder %s14, 0
    %p35 = por %p33, %p34
    %p36 = scmp.ne.s32.totalorder %s22, %s23
    %p37 = scmp.eq.s32.totalorder %s15, 1
    %p38 = por %p36, %p37
    %p40 = scmp.ne.s32.totalorder %s23, %s39
    %p41 = scmp.eq.s32.totalorder %s15, 0
    %p42 = por %p40, %p41
    %s44 = sadd.s32 %s43, 1
    %p47 = scmp.eq.s32.totalorder %s9, 1
    %p48 = scmp.ne.s32.totalorder %s43, %s45
    %p49 = scmp.eq.s32.totalorder %s9, 0
    %p50 = por %p48, %p49
    %p51 = scmp.ne.s32.totalorder %s43, %s45
    %p52 = scmp.eq.s32.totalorder %s14, 1
    %p53 = por %p51, %p52
    %p54 = scmp.ne.s32.totalorder %s45, %s46
    %p55 = scmp.eq.s32.totalorder %s14, 0
    %p56 = por %p54, %p55
    %p57 = scmp.ne.s32.totalorder %s45, %s46
    %p58 = scmp.eq.s32.totalorder %s15, 1
    %p59 = por %p57, %p58
    %p61 = scmp.ne.s32.totalorder %s46, %s60
    %p62 = scmp.eq.s32.totalorder %s15, 0
    %p63 = por %p61, %p62
    %s65 = sadd.s32 %s64, 1
    %p68 = scmp.eq.s32.totalorder %s9, 1
    %p69 = scmp.ne.s32.totalorder %s64, %s66
    %p70 = scmp.eq.s32.totalorder %s9, 0
    %p71 = por %p69, %p70
    %p72 = scmp.ne.s32.totalorder %s64, %s66
    %p73 = scmp.eq.s32.totalorder %s14, 1
    %p74 = por %p72, %p73
    %p75 = scmp.ne.s32.totalorder %s66, %s67
    %p76 = scmp.eq.s32.totalorder %s14, 0
    %p77 = por %p75, %p76
    %p78 = scmp.ne.s32.totalorder %s66, %s67
    %p79 = scmp.eq.s32.totalorder %s15, 1
    %p80 = por %p78, %p79
    %p82 = scmp.ne.s32.totalorder %s67, %s81
    %p83 = scmp.eq.s32.totalorder %s15, 0
    %p84 = por %p82, %p83
    %s85 = ssub.s32 %s9, %s16
    %p86 = scmp.eq.s32.totalorder %s85, 0
    %s88 = sadd.s32 %s87, 1
    %s89 = scalar_select %p86, %s87, %s88
    %p92 = pneg %p86
    %p93 = scmp.eq.s32.totalorder %s9, 1
    %p94 = por %p92, %p93
    %p95 = scmp.ne.s32.totalorder %s87, %s90
    %p96 = scmp.eq.s32.totalorder %s9, 0
    %p97 = por %p95, %p96
    %p98 = scmp.ne.s32.totalorder %s87, %s90
    %p99 = scmp.eq.s32.totalorder %s14, 1
    %p100 = por %p98, %p99
    %p101 = scmp.ne.s32.totalorder %s90, %s91
    %p102 = scmp.eq.s32.totalorder %s14, 0
    %p103 = por %p101, %p102
    %p104 = scmp.ne.s32.totalorder %s90, %s91
    %p105 = scmp.eq.s32.totalorder %s15, 1
    %p106 = por %p104, %p105
    %p108 = scmp.ne.s32.totalorder %s91, %s107
    %p109 = scmp.eq.s32.totalorder %s15, 0
    %p110 = por %p108, %p109
    %p111 = scmp.le.s32.totalorder 1, %s9
    %p112 = scmp.lt.s32.totalorder %s9, 3
    %p113 = pnand %p111, %p112
    %p114 = pneg %p113
    // Predicated region
    $region9: #{residual_block.5} parent=5 // pred_check
      _
    $region10: #{residual_block.5} parent=5 // pred_check_branch
      %116 = sbr.rel (%p113) target = $region12
    $region11: #{residual_block.5} parent=5 // pred_region
      %s117 = ssub.s32 %s9, 1
      // Predicated region
      $region13: #{residual_block.5} parent=11 // pred_check
        %p118 = pneg %p56
      $region14: #{residual_block.5} parent=11 // pred_check_branch
        %120 = sbr.rel (%p118) target = $region16
      $region15: #{residual_block.5} parent=11 // pred_region
        _
      $region16: #{residual_block.5} parent=11 // pred_fallthru
        _
      // Predicated region
      $region17: #{residual_block.5} parent=11 // pred_check
        %p121 = pneg %p77
      $region18: #{residual_block.5} parent=11 // pred_check_branch
        %123 = sbr.rel (%p121) target = $region20
      $region19: #{residual_block.5} parent=11 // pred_region
        _
      $region20: #{residual_block.5} parent=11 // pred_fallthru
        _
    $region12: #{residual_block.5} parent=5 // pred_fallthru
      _
    %p124 = scmp.lt.s32.totalorder %s9, 2
    // Predicated region
    $region21: #{residual_block.5} parent=5 // pred_check
      %p125 = pneg %p124
    $region22: #{residual_block.5} parent=5 // pred_check_branch
      %127 = sbr.rel (%p125) target = $region24
    $region23: #{residual_block.5} parent=5 // pred_region
      // Predicated region
      $region25: #{residual_block.5} parent=23 // pred_check
        %p128 = pneg %p29
      $region26: #{residual_block.5} parent=23 // pred_check_branch
        %130 = sbr.rel (%p128) target = $region28
      $region27: #{residual_block.5} parent=23 // pred_region
        %s131 = smul.u32 2, %s9
        %p132 = scmp.lt.s32.totalorder %s131, 3
        %s133 = scalar_select %p132, %s131, 3
        %s134 = smul.addr %s133, 8
        %s135 = scalar_lea.vmem %s0, %s134
        %s136 = smul.u32 2, %s9
      $region28: #{residual_block.5} parent=23 // pred_fallthru
        _
    $region24: #{residual_block.5} parent=5 // pred_fallthru
      _
    %p137 = scmp.le.s32.totalorder 1, %s9
    %p138 = scmp.lt.s32.totalorder %s9, 3
    %p139 = pnand %p137, %p138
    %p140 = pneg %p139
    // Predicated region
    $region29: #{residual_block.5} parent=5 // pred_check
      _
    $region30: #{residual_block.5} parent=5 // pred_check_branch
      %142 = sbr.rel (%p139) target = $region32
    $region31: #{residual_block.5} parent=5 // pred_region
      %s143 = ssub.s32 %s9, 1
      %s144 = smul.u32 2, %s14
      %p145 = scmp.lt.s32.totalorder %s144, 3
      %s146 = scalar_select %p145, %s144, 3
      %s147 = smul.addr %s146, 8
      %s148 = scalar_lea.vmem %s0, %s147
      %p149 = pneg %p35
      %p150 = pneg %p32
      %p151 = pneg %p56
      %p152 = pneg %p53
      %p153 = pneg %p77
      %p154 = pneg %p74
      %p155 = pneg %p103
      %p156 = pneg %p100
      %s157 = smul.u32 2, %s14
      %p158 = scmp.lt.s32.totalorder %s157, 3
      %s159 = scalar_select %p158, %s157, 3
      %s160 = smul.addr %s159, 4
      %s161 = scalar_lea.vmem %s3, %s160
      %s162 = smul.u32 2, %s14
      %p163 = scmp.lt.s32.totalorder %s162, 3
      %s164 = scalar_select %p163, %s162, 3
      %s165 = smul.addr %s164, 8
      %s166 = scalar_lea.vmem %s0, %s165
      %s167 = smul.u32 2, %s14
      %s168 = smul.u32 2, %s14
      %p169 = scmp.lt.s32.totalorder %s168, 3
      %s170 = scalar_select %p169, %s168, 3
      %s171 = smul.addr %s170, 4
      %s172 = scalar_lea.vmem %s3, %s171
      %s173 = smul.u32 2, %s14
      %v174 = vld [vmem:[%s166] sm:$0xff]
      %v175 = vld [vmem:[%s166 + $0x8] sm:$0xff]
      %v176 = vld [vmem:[%s1] sm:$0xff]
      %178 = vset.pattern.permute.xlu0 0
      %179 = vperm.xlu0 %178, %v176
      %v180 = vpop.permute.xlu0 %179
      %v182 = vmul.f32 %v174, %v180
      %v183 = vmul.f32 %v175, %v180
      %v184 = vld [vmem:[%s2] sm:$0xff]
      %186 = vset.pattern.permute.xlu0 0
      %187 = vperm.xlu0 %186, %v184
      %v188 = vpop.permute.xlu0 %187
      %v190 = vadd.f32 %v182, %v188
      %v191 = vadd.f32 %v183, %v188
      %v192 = vmax.f32 %v190, 0.0
      %v193 = vmax.f32 %v191, 0.0
      %v194 = vpack.c.bf16 %v192, %v192
      %v195 = vpack.c.bf16 %v193, %v193
      %v198 = vunpack.c.l.b16 %v194
      %v199 = vunpack.c.l.b16 %v195
      %v200 = vpack.c.b16 %v199, %v198
      %202 = vst [vmem:[%s172] sm:$0xff] %v200
      %s203 = smul.u32 2, %s14
      %p204 = scmp.lt.s32.totalorder %s203, 3
      %s205 = scalar_select %p204, %s203, 3
      %s206 = smul.addr %s205, 4
      %s207 = scalar_lea.vmem %s3, %s206
      // Predicated region
      $region33: #{residual_block.5} parent=31 // pred_check
        %p208 = pneg %p100
      $region34: #{residual_block.5} parent=31 // pred_check_branch
        %210 = sbr.rel (%p208) target = $region36
      $region35: #{residual_block.5} parent=31 // pred_region
        %s211 = smul.u32 2, %s14
      $region36: #{residual_block.5} parent=31 // pred_fallthru
        _
    $region32: #{residual_block.5} parent=5 // pred_fallthru
      _
    %p212 = scmp.le.s32.totalorder 2, %s9
    // Predicated region
    $region37: #{residual_block.5} parent=5 // pred_check
      %p213 = pneg %p212
    $region38: #{residual_block.5} parent=5 // pred_check_branch
      %215 = sbr.rel (%p213) target = $region40
    $region39: #{residual_block.5} parent=5 // pred_region
      %s216 = ssub.s32 %s9, 2
      // Predicated region
      $region41: #{residual_block.5} parent=39 // pred_check
        %p217 = pneg %p106
      $region42: #{residual_block.5} parent=39 // pred_check_branch
        %219 = sbr.rel (%p217) target = $region44
      $region43: #{residual_block.5} parent=39 // pred_region
        %s220 = smul.u32 2, %s15
        %p221 = scmp.lt.s32.totalorder %s220, 3
        %s222 = scalar_select %p221, %s220, 3
        %s223 = smul.addr %s222, 4
        %s224 = scalar_lea.vmem %s3, %s223
      $region44: #{residual_block.5} parent=39 // pred_fallthru
        _
    $region40: #{residual_block.5} parent=5 // pred_fallthru
      _
  $region6: #{residual_block.5} parent=0 // loop_footer
    %s13 = sadd.s32 1, %s9
  $region7: #{residual_block.5} parent=0 // loop_footer_branch
    %8 = sbr.rel target = $region3
  $region8: #{residual_block.5} parent=0 // loop_exit
    _

// kernel: residual_block.4
$region0: #{residual_block.4}
  #allocation0 [shape = 'u32[]', space=smem, size = 0x4, offset = 0x4, fixed_abs, tag = 'smem constant byte address 0x4 - core index']
  #allocation1 [shape = 'u32[144,128]{1,0:T(1,128)}', space=vmem, size = 0x12000, scoped, tag = 'internal scratch']
  %s0 = inlined_call_operand.vmem [shape: bf16[8,72], index: 0, kind: input, shape index: {}]
  %s1 = inlined_call_operand.vmem [shape: bf16[72,512], index: 1, kind: input, shape index: {}]
  %s2 = inlined_call_operand.vmem [shape: f32[8,512], index: 2, kind: output, shape index: {0}]
  %s3 = inlined_call_operand.vmem [shape: f32[8,1], index: 3, kind: output, shape index: {1}]
  %s4 = inlined_call_operand.vmem [shape: f32[8,1], index: 4, kind: output, shape index: {2}]
  %5 = xla_tuple %s2, %s3, %s4
  %s6 = sld [smem:[#allocation0]]
  $region99: #{residual_block.4} parent=0
    _
  %s8 = ssub.s32 1, %s6
  %s9 = scalar_select 0, %s8, %s6
  $region1: #{residual_block.4} parent=0
    #allocation2 [shape = 'u8[73728]{0}', space=vmem, size = 0x12000, scoped, tag = 'input window, operand 1']
    loop: start=0, step=1, limit=4
    $region2: #{residual_block.4} parent=1 // loop_pre_header
      _
    $region3: #{residual_block.4} parent=1 // loop_header
      %s11 = sphi 0, %s15
      %p12 = scmp.ge.s32.totalorder %s11, 4
      %s19 = sphi 0, %s19
      %s21 = sphi 0, %s19
      %s22 = sphi 0, %s21
      %s36 = sphi 0, %s22
      %s42 = sphi 0, %s44
      %s45 = sphi 0, %s42
      %s46 = sphi 0, %s45
      %s62 = sphi 0, %s46
      %s68 = sphi 0, %s70
      %s71 = sphi 0, %s68
      %s72 = sphi 0, %s71
      %s88 = sphi 0, %s72
      %s92 = sphi 0, %s92
      %s94 = sphi 0, %s92
      %s95 = sphi 0, %s94
      %s109 = sphi 0, %s95
      %s113 = sphi 0, %s113
      %s115 = sphi 0, %s113
      %s116 = sphi 0, %s115
      %s130 = sphi 0, %s116
    $region4: #{residual_block.4} parent=1 // loop_header_branch
      %14 = sbr.rel (%p12) target = $region8
    $region5: #{residual_block.4} parent=1 // loop_body
      %s16 = ssub.s32 %s11, 1
      %s17 = ssub.s32 %s11, 2
      %s18 = sadd.s32 %s11, 1
      %s20 = sadd.s32 %s19, 1
      %p23 = scmp.eq.s32.totalorder %s11, 1
      %p24 = scmp.ne.s32.totalorder %s19, %s21
      %p25 = scmp.eq.s32.totalorder %s11, 0
      %p26 = por %p24, %p25
      %p27 = scmp.ne.s32.totalorder %s19, %s21
      %p28 = scmp.eq.s32.totalorder %s16, 1
      %p29 = por %p27, %p28
      %p30 = scmp.ne.s32.totalorder %s21, %s22
      %p31 = scmp.eq.s32.totalorder %s16, 0
      %p32 = por %p30, %p31
      %p33 = scmp.ne.s32.totalorder %s21, %s22
      %p34 = scmp.eq.s32.totalorder %s17, 1
      %p35 = por %p33, %p34
      %p37 = scmp.ne.s32.totalorder %s22, %s36
      %p38 = scmp.eq.s32.totalorder %s17, 0
      %p39 = por %p37, %p38
      %s40 = ssub.s32 %s11, %s18
      %p41 = scmp.eq.s32.totalorder %s40, 0
      %s43 = sadd.s32 %s42, 1
      %s44 = scalar_select %p41, %s42, %s43
      %p47 = pneg %p41
      %p48 = scmp.eq.s32.totalorder %s11, 1
      %p49 = por %p47, %p48
      %p50 = scmp.ne.s32.totalorder %s42, %s45
      %p51 = scmp.eq.s32.totalorder %s11, 0
      %p52 = por %p50, %p51
      %p53 = scmp.ne.s32.totalorder %s42, %s45
      %p54 = scmp.eq.s32.totalorder %s16, 1
      %p55 = por %p53, %p54
      %p56 = scmp.ne.s32.totalorder %s45, %s46
      %p57 = scmp.eq.s32.totalorder %s16, 0
      %p58 = por %p56, %p57
      %p59 = scmp.ne.s32.totalorder %s45, %s46
      %p60 = scmp.eq.s32.totalorder %s17, 1
      %p61 = por %p59, %p60
      %p63 = scmp.ne.s32.totalorder %s46, %s62
      %p64 = scmp.eq.s32.totalorder %s17, 0
      %p65 = por %p63, %p64
      %s66 = ssub.s32 %s11, %s18
      %p67 = scmp.eq.s32.totalorder %s66, 0
      %s69 = sadd.s32 %s68, 1
      %s70 = scalar_select %p67, %s68, %s69
      %p73 = pneg %p67
      %p74 = scmp.eq.s32.totalorder %s11, 1
      %p75 = por %p73, %p74
      %p76 = scmp.ne.s32.totalorder %s68, %s71
      %p77 = scmp.eq.s32.totalorder %s11, 0
      %p78 = por %p76, %p77
      %p79 = scmp.ne.s32.totalorder %s68, %s71
      %p80 = scmp.eq.s32.totalorder %s16, 1
      %p81 = por %p79, %p80
      %p82 = scmp.ne.s32.totalorder %s71, %s72
      %p83 = scmp.eq.s32.totalorder %s16, 0
      %p84 = por %p82, %p83
      %p85 = scmp.ne.s32.totalorder %s71, %s72
      %p86 = scmp.eq.s32.totalorder %s17, 1
      %p87 = por %p85, %p86
      %p89 = scmp.ne.s32.totalorder %s72, %s88
      %p90 = scmp.eq.s32.totalorder %s17, 0
      %p91 = por %p89, %p90
      %s93 = sadd.s32 %s92, 1
      %p96 = scmp.eq.s32.totalorder %s11, 1
      %p97 = scmp.ne.s32.totalorder %s92, %s94
      %p98 = scmp.eq.s32.totalorder %s11, 0
      %p99 = por %p97, %p98
      %p100 = scmp.ne.s32.totalorder %s92, %s94
      %p101 = scmp.eq.s32.totalorder %s16, 1
      %p102 = por %p100, %p101
      %p103 = scmp.ne.s32.totalorder %s94, %s95
      %p104 = scmp.eq.s32.totalorder %s16, 0
      %p105 = por %p103, %p104
      %p106 = scmp.ne.s32.totalorder %s94, %s95
      %p107 = scmp.eq.s32.totalorder %s17, 1
      %p108 = por %p106, %p107
      %p110 = scmp.ne.s32.totalorder %s95, %s109
      %p111 = scmp.eq.s32.totalorder %s17, 0
      %p112 = por %p110, %p111
      %s114 = sadd.s32 %s113, 1
      %p117 = scmp.eq.s32.totalorder %s11, 1
      %p118 = scmp.ne.s32.totalorder %s113, %s115
      %p119 = scmp.eq.s32.totalorder %s11, 0
      %p120 = por %p118, %p119
      %p121 = scmp.ne.s32.totalorder %s113, %s115
      %p122 = scmp.eq.s32.totalorder %s16, 1
      %p123 = por %p121, %p122
      %p124 = scmp.ne.s32.totalorder %s115, %s116
      %p125 = scmp.eq.s32.totalorder %s16, 0
      %p126 = por %p124, %p125
      %p127 = scmp.ne.s32.totalorder %s115, %s116
      %p128 = scmp.eq.s32.totalorder %s17, 1
      %p129 = por %p127, %p128
      %p131 = scmp.ne.s32.totalorder %s116, %s130
      %p132 = scmp.eq.s32.totalorder %s17, 0
      %p133 = por %p131, %p132
      %p134 = scmp.le.s32.totalorder 1, %s11
      %p135 = scmp.lt.s32.totalorder %s11, 3
      %p136 = pnand %p134, %p135
      %p137 = pneg %p136
      // Predicated region
      $region9: #{residual_block.4} parent=5 // pred_check
        _
      $region10: #{residual_block.4} parent=5 // pred_check_branch
        %139 = sbr.rel (%p136) target = $region12
      $region11: #{residual_block.4} parent=5 // pred_region
        %s140 = ssub.s32 %s11, 1
        // Predicated region
        $region13: #{residual_block.4} parent=11 // pred_check
          %p141 = pneg %p32
        $region14: #{residual_block.4} parent=11 // pred_check_branch
          %143 = sbr.rel (%p141) target = $region16
        $region15: #{residual_block.4} parent=11 // pred_region
          _
        $region16: #{residual_block.4} parent=11 // pred_fallthru
          _
      $region12: #{residual_block.4} parent=5 // pred_fallthru
        _
      %p144 = scmp.lt.s32.totalorder %s11, 2
      // Predicated region
      $region17: #{residual_block.4} parent=5 // pred_check
        %p145 = pneg %p144
      $region18: #{residual_block.4} parent=5 // pred_check_branch
        %147 = sbr.rel (%p145) target = $region20
      $region19: #{residual_block.4} parent=5 // pred_region
        // Predicated region
        $region21: #{residual_block.4} parent=19 // pred_check
          %p148 = pneg %p52
        $region22: #{residual_block.4} parent=19 // pred_check_branch
          %150 = sbr.rel (%p148) target = $region24
        $region23: #{residual_block.4} parent=19 // pred_region
          %s151 = sand.u32 %s42, 1
          %s152 = sand.u32 %s42, 1
          %s153 = smul.addr %s152, 72
          %s154 = scalar_lea.vmem [#allocation2], %s153
          %s155 = smul.u32 2, %s11
          %s156 = smul.addr %s155, 4
          %s157 = scalar_lea.vmem %s1, %s156
          // Predicated region
          $region25: #{residual_block.4} parent=23 // pred_check
            _
          $region26: #{residual_block.4} parent=23 // pred_check_branch
            %159 = sbr.rel (0) target = $region28
          $region27: #{residual_block.4} parent=23 // pred_region
            // Predicated region
            $region29: #{residual_block.4} parent=27 // pred_check
              _
            $region30: #{residual_block.4} parent=27 // pred_check_branch
              %161 = sbr.rel (0) target = $region32
            $region31: #{residual_block.4} parent=27 // pred_region
              // Predicated region
              $region44: #{residual_block.4} parent=31 // pred_check
                _
              $region45: #{residual_block.4} parent=31 // pred_check_branch
                %192 = sbr.rel (0) target = $region47
              $region46: #{residual_block.4} parent=31 // pred_region
                loop: start=0, step=1, limit=1
                $region48: #{residual_block.4} parent=46 // loop_pre_header
                  _
                $region49: #{residual_block.4} parent=46 // loop_header
                  %s194 = sphi 0, %s198
                  %p195 = scmp.ge.s32.totalorder %s194, 1
                  %s199 = sphi %s157, %s157
                  %s200 = sphi %s154, %s154
                $region50: #{residual_block.4} parent=46 // loop_header_branch
                  %197 = sbr.rel (%p195) target = $region54
                $region51: #{residual_block.4} parent=46 // loop_body
                  %v201 = vld [vmem:[%s199] sm:$0xff]
                  %202 = vst [vmem:[%s200] sm:$0xff] %v201
                  %v203 = vld [vmem:[%s199 + $0x10] sm:$0xff]
                  %204 = vst [vmem:[%s200 + $0x8] sm:$0xff] %v203
                  %v205 = vld [vmem:[%s199 + $0x20] sm:$0xff]
                  %206 = vst [vmem:[%s200 + $0x10] sm:$0xff] %v205
                  %v207 = vld [vmem:[%s199 + $0x30] sm:$0xff]
                  %208 = vst [vmem:[%s200 + $0x18] sm:$0xff] %v207
                  %v209 = vld [vmem:[%s199 + $0x40] sm:$0xff]
                  %210 = vst [vmem:[%s200 + $0x20] sm:$0xff] %v209
                  %v211 = vld [vmem:[%s199 + $0x50] sm:$0xff]
                  %212 = vst [vmem:[%s200 + $0x28] sm:$0xff] %v211
                  %v213 = vld [vmem:[%s199 + $0x60] sm:$0xff]
                  %214 = vst [vmem:[%s200 + $0x30] sm:$0xff] %v213
                  %v215 = vld [vmem:[%s199 + $0x70] sm:$0xff]
                  %216 = vst [vmem:[%s200 + $0x38] sm:$0xff] %v215
                  %v217 = vld [vmem:[%s199 + $0x80] sm:$0xff]
                  %218 = vst [vmem:[%s200 + $0x40] sm:$0xff] %v217
                $region52: #{residual_block.4} parent=46 // loop_footer
                  %s198 = sadd.s32 1, %s194
                $region53: #{residual_block.4} parent=46 // loop_footer_branch
                  %193 = sbr.rel target = $region49
                $region54: #{residual_block.4} parent=46 // loop_exit
                  _
              $region47: #{residual_block.4} parent=31 // pred_fallthru
                _
              // Predicated region
              $region55: #{residual_block.4} parent=31 // pred_check
                _
              $region56: #{residual_block.4} parent=31 // pred_check_branch
                %220 = sbr.rel target = $region58
              $region57: #{residual_block.4} parent=31 // pred_region
                _
              $region58: #{residual_block.4} parent=31 // pred_fallthru
                _
            $region32: #{residual_block.4} parent=27 // pred_fallthru
              _
            // Predicated region
            $region33: #{residual_block.4} parent=27 // pred_check
              _
            $region34: #{residual_block.4} parent=27 // pred_check_branch
              %163 = sbr.rel target = $region36
            $region35: #{residual_block.4} parent=27 // pred_region
              loop: start=0, step=1, limit=1
              $region37: #{residual_block.4} parent=35 // loop_pre_header
                _
              $region38: #{residual_block.4} parent=35 // loop_header
                %s166 = sphi 0, %s170
                %p167 = scmp.ge.s32.totalorder %s166, 1
                %s171 = sphi %s157, %s157
                %s172 = sphi %s154, %s154
              $region39: #{residual_block.4} parent=35 // loop_header_branch
                %169 = sbr.rel (%p167) target = $region43
              $region40: #{residual_block.4} parent=35 // loop_body
                %v173 = vld [vmem:[%s171] sm:$0xff]
                %174 = vst [vmem:[%s172] sm:$0xff] %v173
                %v175 = vld [vmem:[%s171 + $0x10] sm:$0xff]
                %176 = vst [vmem:[%s172 + $0x8] sm:$0xff] %v175
                %v177 = vld [vmem:[%s171 + $0x20] sm:$0xff]
                %178 = vst [vmem:[%s172 + $0x10] sm:$0xff] %v177
                %v179 = vld [vmem:[%s171 + $0x30] sm:$0xff]
                %180 = vst [vmem:[%s172 + $0x18] sm:$0xff] %v179
                %v181 = vld [vmem:[%s171 + $0x40] sm:$0xff]
                %182 = vst [vmem:[%s172 + $0x20] sm:$0xff] %v181
                %v183 = vld [vmem:[%s171 + $0x50] sm:$0xff]
                %184 = vst [vmem:[%s172 + $0x28] sm:$0xff] %v183
                %v185 = vld [vmem:[%s171 + $0x60] sm:$0xff]
                %186 = vst [vmem:[%s172 + $0x30] sm:$0xff] %v185
                %v187 = vld [vmem:[%s171 + $0x70] sm:$0xff]
                %188 = vst [vmem:[%s172 + $0x38] sm:$0xff] %v187
                %v189 = vld [vmem:[%s171 + $0x80] sm:$0xff]
                %190 = vst [vmem:[%s172 + $0x40] sm:$0xff] %v189
              $region41: #{residual_block.4} parent=35 // loop_footer
                %s170 = sadd.s32 1, %s166
              $region42: #{residual_block.4} parent=35 // loop_footer_branch
                %165 = sbr.rel target = $region38
              $region43: #{residual_block.4} parent=35 // loop_exit
                _
            $region36: #{residual_block.4} parent=27 // pred_fallthru
              _
          $region28: #{residual_block.4} parent=23 // pred_fallthru
            _
          %221 = vnop
        $region24: #{residual_block.4} parent=19 // pred_fallthru
          _
      $region20: #{residual_block.4} parent=5 // pred_fallthru
        _
      %p222 = scmp.le.s32.totalorder 1, %s11
      %p223 = scmp.lt.s32.totalorder %s11, 3
      %p224 = pnand %p222, %p223
      %p225 = pneg %p224
      // Predicated region
      $region59: #{residual_block.4} parent=5 // pred_check
        _
      $region60: #{residual_block.4} parent=5 // pred_check_branch
        %227 = sbr.rel (%p224) target = $region62
      $region61: #{residual_block.4} parent=5 // pred_region
        %s228 = ssub.s32 %s11, 1
        %s229 = sand.u32 %s45, 1
        %s230 = sand.u32 %s45, 1
        %s231 = smul.addr %s230, 72
        %s232 = scalar_lea.vmem [#allocation2], %s231
        // Predicated region
        $region63: #{residual_block.4} parent=61 // pred_check
          %p233 = pneg %p58
        $region64: #{residual_block.4} parent=61 // pred_check_branch
          %235 = sbr.rel (%p233) target = $region66
        $region65: #{residual_block.4} parent=61 // pred_region
          _
        $region66: #{residual_block.4} parent=61 // pred_fallthru
          _
        %p236 = pneg %p32
        %p237 = pneg %p29
        %s238 = sand.u32 %s45, 1
        %s239 = sand.u32 %s45, 1
        %s240 = smul.addr %s239, 72
        %s241 = scalar_lea.vmem [#allocation2], %s240
        %p242 = pneg %p58
        %p243 = pneg %p55
        %p244 = pneg %p84
        %p245 = pneg %p81
        %s246 = smul.u32 2, %s16
        %p247 = scmp.lt.s32.totalorder %s246, 3
        %s248 = scalar_select %p247, %s246, 3
        %s249 = smul.addr %s248, 8
        %s250 = scalar_lea.vmem %s2, %s249
        %p251 = pneg %p105
        %p252 = pneg %p102
        %p253 = pneg %p126
        %p254 = pneg %p123
        %s255 = smul.u32 2, %s16
        %s256 = smul.u32 2, %s16
        %p257 = scmp.lt.s32.totalorder %s256, 3
        %s258 = scalar_select %p257, %s256, 3
        %s259 = smul.addr %s258, 8
        %s260 = scalar_lea.vmem %s2, %s259
        %s261 = smul.u32 2, %s16
        %v263 = vld [vmem:[%s0] sm:$0xf]
        %v264 = vld [vmem:[%s232] sm:$0xff]
        %v265 = vld [vmem:[%s232 + $0x8] sm:$0xff]
        %v266 = vld [vmem:[%s232 + $0x10] sm:$0xff]
        %v267 = vld [vmem:[%s232 + $0x18] sm:$0xff]
        %v268 = vld [vmem:[%s232 + $0x20] sm:$0xff]
        %v269 = vld [vmem:[%s232 + $0x28] sm:$0xff]
        %v270 = vld [vmem:[%s232 + $0x30] sm:$0xff]
        %v271 = vld [vmem:[%s232 + $0x38] sm:$0xff]
        %v272 = vld [vmem:[%s232 + $0x40] sm:$0xff]
        %v282 = vunpack.c.l.b16 %v264
        %v283 = vunpack.c.h.b16 %v264
        %v284 = vunpack.c.l.b16 %v265
        %v285 = vunpack.c.h.b16 %v265
        %v286 = vunpack.c.l.b16 %v266
        %v287 = vunpack.c.h.b16 %v266
        %v288 = vunpack.c.l.b16 %v267
        %v289 = vunpack.c.h.b16 %v267
        %v290 = vunpack.c.l.b16 %v268
        %v291 = vunpack.c.h.b16 %v268
        %v292 = vunpack.c.l.b16 %v269
        %v293 = vunpack.c.h.b16 %v269
        %v294 = vunpack.c.l.b16 %v270
        %v295 = vunpack.c.h.b16 %v270
        %v296 = vunpack.c.l.b16 %v271
        %v297 = vunpack.c.h.b16 %v271
        %v298 = vunpack.c.l.b16 %v272
        %v299 = vunpack.c.h.b16 %v272
        %v300 = vpack.c.b16 %v284, %v282
        %v301 = vpack.c.b16 %v285, %v283
        %v302 = vpack.c.b16 %v288, %v286
        %v303 = vpack.c.b16 %v289, %v287
        %v304 = vpack.c.b16 %v292, %v290
        %v305 = vpack.c.b16 %v293, %v291
        %v306 = vpack.c.b16 %v296, %v294
        %v307 = vpack.c.b16 %v297, %v295
        %v308 = vpack.c.b16 %v298, %v298
        %v309 = vpack.c.b16 %v299, %v299
        %vm318 = vcmask 588800
        %v320 = vsel %vm318, %v263, 0
        %vm322 = vcmask 1043456
        %v324 = vsel %vm322, %v308, 0
        %v327 = vsel %vm322, %v309, 0
        %329 = vmatprep.subr.bf16.mxu0 %v301
        %330 = vmatpush1.bf16.msra.mxu0 %v300
        %331 = vmatprep.subr.bf16.mxu0 %v303
        %332 = vmatpush1.bf16.msra.mxu0 %v302
        %333 = vmatprep.subr.bf16.mxu0 %v305
        %334 = vmatpush1.bf16.msra.mxu0 %v304
        %335 = vmatprep.subr.bf16.mxu0 %v307
        %336 = vmatpush1.bf16.msra.mxu0 %v306
        %337 = vmatprep.subr.bf16.mxu0 %v327
        %338 = vmatpush1.bf16.msra.mxu0 %v324
        %339 = vmatprep.subr.bf16.mxu0 0
        %340 = vmatpush1.bf16.msra.mxu0 0
        %341 = vmatprep.subr.bf16.mxu0 0
        %342 = vmatpush1.bf16.msra.mxu0 0
        %343 = vmatprep.subr.bf16.mxu0 0
        %344 = vmatpush1.bf16.msra.mxu0 0
        %345 = vmatprep.subr.bf16.mxu0 0
        %346 = vmatpush1.bf16.msra.mxu0 0
        %347 = vmatprep.subr.bf16.mxu0 0
        %348 = vmatpush1.bf16.msra.mxu0 0
        %349 = vmatprep.subr.bf16.mxu0 0
        %350 = vmatpush1.bf16.msra.mxu0 0
        %351 = vmatprep.subr.bf16.mxu0 0
        %352 = vmatpush1.bf16.msra.mxu0 0
        %353 = vmatprep.subr.bf16.mxu0 0
        %354 = vmatpush1.bf16.msra.mxu0 0
        %355 = vmatprep.subr.bf16.mxu0 0
        %356 = vmatpush1.bf16.msra.mxu0 0
        %357 = vmatprep.subr.bf16.mxu0 0
        %358 = vmatpush1.bf16.msra.mxu0 0
        %359 = vmatprep.subr.bf16.mxu0 0
        %360 = vmatpush1.bf16.msra.mxu0 0
        %361 = vmatprep.mubr.bf16.mxu0 0
        %362 = vmatmul.mubr.bf16.gmra.mrb[0].mxu0 %v320
        %v363 = vpop.f32.mrb[0].mxu0
        %v364 = vadd.f32 0.0, %v363
        %v365 = vpop.f32.mrb[0].mxu0
        %v366 = vadd.f32 0.0, %v365
        %v367 = vpop.f32.mrb[0].mxu0
        %v368 = vpop.f32.mrb[0].mxu0
        %369 = vdwg.mxu0
        %p370 = scmp.eq.s32.totalorder %s16, 0
        // Predicated region
        $region67: #{residual_block.4} parent=61 // pred_check
          %p371 = pneg %p370
        $region68: #{residual_block.4} parent=61 // pred_check_branch
          %373 = sbr.rel (%p371) target = $region70
        $region69: #{residual_block.4} parent=61 // pred_region
          %vm374 = vcmask 7168
          %375 = vst.msk [vmem:[%s3] sm:$0xff] %vm374, 0.0
          %376 = vst.msk [vmem:[%s4] sm:$0xff] %vm374, 0.0
        $region70: #{residual_block.4} parent=61 // pred_fallthru
          _
        %v377 = vld [vmem:[%s3] sm:$0xff]
        %v378 = vadd.f32 %v364, %v366
        %379 = vadd.xlane.f32.xlu0 %v378
        %v380 = vpop.xlane.xlu0 %379
        %v381 = vadd.f32 %v377, %v380
        %vm382 = vcmask 7168
        %383 = vst.msk [vmem:[%s3] sm:$0xff] %vm382, %v381
        %v384 = vld [vmem:[%s4] sm:$0xff]
        %v385 = vmul.f32 %v364, %v364
        %v386 = vmul.f32 %v366, %v366
        %v387 = vadd.f32 %v385, %v386
        %388 = vadd.xlane.f32.xlu0 %v387
        %v389 = vpop.xlane.xlu0 %388
        %v390 = vadd.f32 %v384, %v389
        %391 = vst.msk [vmem:[%s4] sm:$0xff] %vm382, %v390
        %392 = vst [vmem:[%s260] sm:$0xff] %v364
        %393 = vst [vmem:[%s260 + $0x8] sm:$0xff] %v366
        %s394 = smul.u32 2, %s16
        %p395 = scmp.lt.s32.totalorder %s394, 3
        %s396 = scalar_select %p395, %s394, 3
        %s397 = smul.addr %s396, 8
        %s398 = scalar_lea.vmem %s2, %s397
        // Predicated region
        $region71: #{residual_block.4} parent=61 // pred_check
          %p399 = pneg %p81
        $region72: #{residual_block.4} parent=61 // pred_check_branch
          %401 = sbr.rel (%p399) target = $region74
        $region73: #{residual_block.4} parent=61 // pred_region
          %s402 = smul.u32 2, %s16
        $region74: #{residual_block.4} parent=61 // pred_fallthru
          _
        // Predicated region
        $region75: #{residual_block.4} parent=61 // pred_check
          %p403 = pneg %p102
        $region76: #{residual_block.4} parent=61 // pred_check_branch
          %405 = sbr.rel (%p403) target = $region78
        $region77: #{residual_block.4} parent=61 // pred_region
          _
        $region78: #{residual_block.4} parent=61 // pred_fallthru
          _
        // Predicated region
        $region79: #{residual_block.4} parent=61 // pred_check
          %p406 = pneg %p123
        $region80: #{residual_block.4} parent=61 // pred_check_branch
          %408 = sbr.rel (%p406) target = $region82
        $region81: #{residual_block.4} parent=61 // pred_region
          _
        $region82: #{residual_block.4} parent=61 // pred_fallthru
          _
        // Predicated region
        $region83: #{residual_block.4} parent=61 // pred_check
          %p409 = pneg %p102
        $region84: #{residual_block.4} parent=61 // pred_check_branch
          %411 = sbr.rel (%p409) target = $region86
        $region85: #{residual_block.4} parent=61 // pred_region
          _
        $region86: #{residual_block.4} parent=61 // pred_fallthru
          _
        // Predicated region
        $region87: #{residual_block.4} parent=61 // pred_check
          %p412 = pneg %p123
        $region88: #{residual_block.4} parent=61 // pred_check_branch
          %414 = sbr.rel (%p412) target = $region90
        $region89: #{residual_block.4} parent=61 // pred_region
          _
        $region90: #{residual_block.4} parent=61 // pred_fallthru
          _
      $region62: #{residual_block.4} parent=5 // pred_fallthru
        _
      %p415 = scmp.le.s32.totalorder 2, %s11
      // Predicated region
      $region91: #{residual_block.4} parent=5 // pred_check
        %p416 = pneg %p415
      $region92: #{residual_block.4} parent=5 // pred_check_branch
        %418 = sbr.rel (%p416) target = $region94
      $region93: #{residual_block.4} parent=5 // pred_region
        %s419 = ssub.s32 %s11, 2
        // Predicated region
        $region95: #{residual_block.4} parent=93 // pred_check
          %p420 = pneg %p87
        $region96: #{residual_block.4} parent=93 // pred_check_branch
          %422 = sbr.rel (%p420) target = $region98
        $region97: #{residual_block.4} parent=93 // pred_region
          %s423 = smul.u32 2, %s17
          %p424 = scmp.lt.s32.totalorder %s423, 3
          %s425 = scalar_select %p424, %s423, 3
          %s426 = smul.addr %s425, 8
          %s427 = scalar_lea.vmem %s2, %s426
        $region98: #{residual_block.4} parent=93 // pred_fallthru
          _
      $region94: #{residual_block.4} parent=5 // pred_fallthru
        _
    $region6: #{residual_block.4} parent=1 // loop_footer
      %s15 = sadd.s32 1, %s11
    $region7: #{residual_block.4} parent=1 // loop_footer_branch
      %10 = sbr.rel target = $region3
    $region8: #{residual_block.4} parent=1 // loop_exit
      _

// kernel: residual_block.7
$region0: #{residual_block.7}
  #allocation0 [shape = 'u32[]', space=smem, size = 0x4, offset = 0x4, fixed_abs, tag = 'smem constant byte address 0x4 - core index']
  #allocation1 [shape = 'u32[144,128]{1,0:T(1,128)}', space=vmem, size = 0x12000, scoped, tag = 'internal scratch']
  %s0 = inlined_call_operand.vmem [shape: f32[8,512], index: 0, kind: input, shape index: {}]
  %s1 = inlined_call_operand.vmem [shape: f32[8,1], index: 1, kind: input, shape index: {}]
  %s2 = inlined_call_operand.vmem [shape: f32[8,1], index: 2, kind: input, shape index: {}]
  %s3 = inlined_call_operand.vmem [shape: f32[8,512], index: 3, kind: input, shape index: {}]
  %s4 = inlined_call_operand.vmem [shape: f32[8,512], index: 4, kind: output, shape index: {}]
  %s5 = sld [smem:[#allocation0]]
  $region49: #{residual_block.7} parent=0
    _
  %s7 = ssub.s32 1, %s5
  %s8 = scalar_select 0, %s7, %s5
  loop: start=0, step=1, limit=4
  $region2: #{residual_block.7} parent=0 // loop_pre_header
    _
  $region3: #{residual_block.7} parent=0 // loop_header
    %s10 = sphi 0, %s14
    %p11 = scmp.ge.s32.totalorder %s10, 4
    %s20 = sphi 0, %s22
    %s23 = sphi 0, %s20
    %s24 = sphi 0, %s23
    %s40 = sphi 0, %s24
    %s44 = sphi 0, %s44
    %s46 = sphi 0, %s44
    %s47 = sphi 0, %s46
    %s61 = sphi 0, %s47
    %s65 = sphi 0, %s65
    %s67 = sphi 0, %s65
    %s68 = sphi 0, %s67
    %s82 = sphi 0, %s68
    %s88 = sphi 0, %s90
    %s91 = sphi 0, %s88
    %s92 = sphi 0, %s91
    %s108 = sphi 0, %s92
    %s114 = sphi 0, %s116
    %s117 = sphi 0, %s114
    %s118 = sphi 0, %s117
    %s134 = sphi 0, %s118
  $region4: #{residual_block.7} parent=0 // loop_header_branch
    %13 = sbr.rel (%p11) target = $region8
  $region5: #{residual_block.7} parent=0 // loop_body
    %s15 = ssub.s32 %s10, 1
    %s16 = ssub.s32 %s10, 2
    %s17 = sadd.s32 %s10, 1
    %s18 = ssub.s32 %s10, %s17
    %p19 = scmp.eq.s32.totalorder %s18, 0
    %s21 = sadd.s32 %s20, 1
    %s22 = scalar_select %p19, %s20, %s21
    %p25 = pneg %p19
    %p26 = scmp.eq.s32.totalorder %s10, 1
    %p27 = por %p25, %p26
    %p28 = scmp.ne.s32.totalorder %s20, %s23
    %p29 = scmp.eq.s32.totalorder %s10, 0
    %p30 = por %p28, %p29
    %p31 = scmp.ne.s32.totalorder %s20, %s23
    %p32 = scmp.eq.s32.totalorder %s15, 1
    %p33 = por %p31, %p32
    %p34 = scmp.ne.s32.totalorder %s23, %s24
    %p35 = scmp.eq.s32.totalorder %s15, 0
    %p36 = por %p34, %p35
    %p37 = scmp.ne.s32.totalorder %s23, %s24
    %p38 = scmp.eq.s32.totalorder %s16, 1
    %p39 = por %p37, %p38
    %p41 = scmp.ne.s32.totalorder %s24, %s40
    %p42 = scmp.eq.s32.totalorder %s16, 0
    %p43 = por %p41, %p42
    %s45 = sadd.s32 %s44, 1
    %p48 = scmp.eq.s32.totalorder %s10, 1
    %p49 = scmp.ne.s32.totalorder %s44, %s46
    %p50 = scmp.eq.s32.totalorder %s10, 0
    %p51 = por %p49, %p50
    %p52 = scmp.ne.s32.totalorder %s44, %s46
    %p53 = scmp.eq.s32.totalorder %s15, 1
    %p54 = por %p52, %p53
    %p55 = scmp.ne.s32.totalorder %s46, %s47
    %p56 = scmp.eq.s32.totalorder %s15, 0
    %p57 = por %p55, %p56
    %p58 = scmp.ne.s32.totalorder %s46, %s47
    %p59 = scmp.eq.s32.totalorder %s16, 1
    %p60 = por %p58, %p59
    %p62 = scmp.ne.s32.totalorder %s47, %s61
    %p63 = scmp.eq.s32.totalorder %s16, 0
    %p64 = por %p62, %p63
    %s66 = sadd.s32 %s65, 1
    %p69 = scmp.eq.s32.totalorder %s10, 1
    %p70 = scmp.ne.s32.totalorder %s65, %s67
    %p71 = scmp.eq.s32.totalorder %s10, 0
    %p72 = por %p70, %p71
    %p73 = scmp.ne.s32.totalorder %s65, %s67
    %p74 = scmp.eq.s32.totalorder %s15, 1
    %p75 = por %p73, %p74
    %p76 = scmp.ne.s32.totalorder %s67, %s68
    %p77 = scmp.eq.s32.totalorder %s15, 0
    %p78 = por %p76, %p77
    %p79 = scmp.ne.s32.totalorder %s67, %s68
    %p80 = scmp.eq.s32.totalorder %s16, 1
    %p81 = por %p79, %p80
    %p83 = scmp.ne.s32.totalorder %s68, %s82
    %p84 = scmp.eq.s32.totalorder %s16, 0
    %p85 = por %p83, %p84
    %s86 = ssub.s32 %s10, %s17
    %p87 = scmp.eq.s32.totalorder %s86, 0
    %s89 = sadd.s32 %s88, 1
    %s90 = scalar_select %p87, %s88, %s89
    %p93 = pneg %p87
    %p94 = scmp.eq.s32.totalorder %s10, 1
    %p95 = por %p93, %p94
    %p96 = scmp.ne.s32.totalorder %s88, %s91
    %p97 = scmp.eq.s32.totalorder %s10, 0
    %p98 = por %p96, %p97
    %p99 = scmp.ne.s32.totalorder %s88, %s91
    %p100 = scmp.eq.s32.totalorder %s15, 1
    %p101 = por %p99, %p100
    %p102 = scmp.ne.s32.totalorder %s91, %s92
    %p103 = scmp.eq.s32.totalorder %s15, 0
    %p104 = por %p102, %p103
    %p105 = scmp.ne.s32.totalorder %s91, %s92
    %p106 = scmp.eq.s32.totalorder %s16, 1
    %p107 = por %p105, %p106
    %p109 = scmp.ne.s32.totalorder %s92, %s108
    %p110 = scmp.eq.s32.totalorder %s16, 0
    %p111 = por %p109, %p110
    %s112 = ssub.s32 %s10, %s17
    %p113 = scmp.eq.s32.totalorder %s112, 0
    %s115 = sadd.s32 %s114, 1
    %s116 = scalar_select %p113, %s114, %s115
    %p119 = pneg %p113
    %p120 = scmp.eq.s32.totalorder %s10, 1
    %p121 = por %p119, %p120
    %p122 = scmp.ne.s32.totalorder %s114, %s117
    %p123 = scmp.eq.s32.totalorder %s10, 0
    %p124 = por %p122, %p123
    %p125 = scmp.ne.s32.totalorder %s114, %s117
    %p126 = scmp.eq.s32.totalorder %s15, 1
    %p127 = por %p125, %p126
    %p128 = scmp.ne.s32.totalorder %s117, %s118
    %p129 = scmp.eq.s32.totalorder %s15, 0
    %p130 = por %p128, %p129
    %p131 = scmp.ne.s32.totalorder %s117, %s118
    %p132 = scmp.eq.s32.totalorder %s16, 1
    %p133 = por %p131, %p132
    %p135 = scmp.ne.s32.totalorder %s118, %s134
    %p136 = scmp.eq.s32.totalorder %s16, 0
    %p137 = por %p135, %p136
    %p138 = scmp.le.s32.totalorder 1, %s10
    %p139 = scmp.lt.s32.totalorder %s10, 3
    %p140 = pnand %p138, %p139
    %p141 = pneg %p140
    // Predicated region
    $region9: #{residual_block.7} parent=5 // pred_check
      _
    $region10: #{residual_block.7} parent=5 // pred_check_branch
      %143 = sbr.rel (%p140) target = $region12
    $region11: #{residual_block.7} parent=5 // pred_region
      %s144 = ssub.s32 %s10, 1
      // Predicated region
      $region13: #{residual_block.7} parent=11 // pred_check
        %p145 = pneg %p57
      $region14: #{residual_block.7} parent=11 // pred_check_branch
        %147 = sbr.rel (%p145) target = $region16
      $region15: #{residual_block.7} parent=11 // pred_region
        _
      $region16: #{residual_block.7} parent=11 // pred_fallthru
        _
      // Predicated region
      $region17: #{residual_block.7} parent=11 // pred_check
        %p148 = pneg %p78
      $region18: #{residual_block.7} parent=11 // pred_check_branch
        %150 = sbr.rel (%p148) target = $region20
      $region19: #{residual_block.7} parent=11 // pred_region
        _
      $region20: #{residual_block.7} parent=11 // pred_fallthru
        _
    $region12: #{residual_block.7} parent=5 // pred_fallthru
      _
    %p151 = scmp.lt.s32.totalorder %s10, 2
    // Predicated region
    $region21: #{residual_block.7} parent=5 // pred_check
      %p152 = pneg %p151
    $region22: #{residual_block.7} parent=5 // pred_check_branch
      %154 = sbr.rel (%p152) target = $region24
    $region23: #{residual_block.7} parent=5 // pred_region
      // Predicated region
      $region25: #{residual_block.7} parent=23 // pred_check
        %p155 = pneg %p30
      $region26: #{residual_block.7} parent=23 // pred_check_branch
        %157 = sbr.rel (%p155) target = $region28
      $region27: #{residual_block.7} parent=23 // pred_region
        %s158 = smul.u32 2, %s10
        %p159 = scmp.lt.s32.totalorder %s158, 3
        %s160 = scalar_select %p159, %s158, 3
        %s161 = smul.addr %s160, 8
        %s162 = scalar_lea.vmem %s0, %s161
        %s163 = smul.u32 2, %s10
      $region28: #{residual_block.7} parent=23 // pred_fallthru
        _
      // Predicated region
      $region29: #{residual_block.7} parent=23 // pred_check
        %p164 = pneg %p98
      $region30: #{residual_block.7} parent=23 // pred_check_branch
        %166 = sbr.rel (%p164) target = $region32
      $region31: #{residual_block.7} parent=23 // pred_region
        %s167 = smul.u32 2, %s10
        %p168 = scmp.lt.s32.totalorder %s167, 3
        %s169 = scalar_select %p168, %s167, 3
        %s170 = smul.addr %s169, 8
        %s171 = scalar_lea.vmem %s3, %s170
        %s172 = smul.u32 2, %s10
      $region32: #{residual_block.7} parent=23 // pred_fallthru
        _
    $region24: #{residual_block.7} parent=5 // pred_fallthru
      _
    %p173 = scmp.le.s32.totalorder 1, %s10
    %p174 = scmp.lt.s32.totalorder %s10, 3
    %p175 = pnand %p173, %p174
    %p176 = pneg %p175
    // Predicated region
    $region33: #{residual_block.7} parent=5 // pred_check
      _
    $region34: #{residual_block.7} parent=5 // pred_check_branch
      %178 = sbr.rel (%p175) target = $region36
    $region35: #{residual_block.7} parent=5 // pred_region
      %s179 = ssub.s32 %s10, 1
      %s180 = smul.u32 2, %s15
      %p181 = scmp.lt.s32.totalorder %s180, 3
      %s182 = scalar_select %p181, %s180, 3
      %s183 = smul.addr %s182, 8
      %s184 = scalar_lea.vmem %s0, %s183
      %p185 = pneg %p36
      %p186 = pneg %p33
      %p187 = pneg %p57
      %p188 = pneg %p54
      %p189 = pneg %p78
      %p190 = pneg %p75
      %s191 = smul.u32 2, %s15
      %p192 = scmp.lt.s32.totalorder %s191, 3
      %s193 = scalar_select %p192, %s191, 3
      %s194 = smul.addr %s193, 8
      %s195 = scalar_lea.vmem %s3, %s194
      %p196 = pneg %p104
      %p197 = pneg %p101
      %p198 = pneg %p130
      %p199 = pneg %p127
      %s200 = smul.u32 2, %s15
      %p201 = scmp.lt.s32.totalorder %s200, 3
      %s202 = scalar_select %p201, %s200, 3
      %s203 = smul.addr %s202, 8
      %s204 = scalar_lea.vmem %s4, %s203
      %s205 = smul.u32 2, %s15
      %p206 = scmp.lt.s32.totalorder %s205, 3
      %s207 = scalar_select %p206, %s205, 3
      %s208 = smul.addr %s207, 8
      %s209 = scalar_lea.vmem %s0, %s208
      %s210 = smul.u32 2, %s15
      %s211 = smul.u32 2, %s15
      %p212 = scmp.lt.s32.totalorder %s211, 3
      %s213 = scalar_select %p212, %s211, 3
      %s214 = smul.addr %s213, 8
      %s215 = scalar_lea.vmem %s3, %s214
      %s216 = smul.u32 2, %s15
      %s217 = smul.u32 2, %s15
      %p218 = scmp.lt.s32.totalorder %s217, 3
      %s219 = scalar_select %p218, %s217, 3
      %s220 = smul.addr %s219, 8
      %s221 = scalar_lea.vmem %s4, %s220
      %s222 = smul.u32 2, %s15
      %v223 = vld [vmem:[%s209] sm:$0xff]
      %v224 = vld [vmem:[%s209 + $0x8] sm:$0xff]
      %v225 = vld [vmem:[%s1] sm:$0xff]
      %227 = vset.pattern.permute.xlu0 0
      %228 = vperm.xlu0 %227, %v225
      %v229 = vpop.permute.xlu0 %228
      %v231 = vmul.f32 %v223, %v229
      %v232 = vmul.f32 %v224, %v229
      %v233 = vld [vmem:[%s2] sm:$0xff]
      %235 = vset.pattern.permute.xlu0 0
      %236 = vperm.xlu0 %235, %v233
      %v237 = vpop.permute.xlu0 %236
      %v239 = vadd.f32 %v231, %v237
      %v240 = vadd.f32 %v232, %v237
      %v241 = vld [vmem:[%s215] sm:$0xff]
      %v242 = vld [vmem:[%s215 + $0x8] sm:$0xff]
      %v243 = vadd.f32 %v239, %v241
      %v244 = vadd.f32 %v240, %v242
      %v245 = vmax.f32 %v243, 0.0
      %v246 = vmax.f32 %v244, 0.0
      %247 = vst [vmem:[%s221] sm:$0xff] %v245
      %248 = vst [vmem:[%s221 + $0x8] sm:$0xff] %v246
      %s249 = smul.u32 2, %s15
      %p250 = scmp.lt.s32.totalorder %s249, 3
      %s251 = scalar_select %p250, %s249, 3
      %s252 = smul.addr %s251, 8
      %s253 = scalar_lea.vmem %s4, %s252
      // Predicated region
      $region37: #{residual_block.7} parent=35 // pred_check
        %p254 = pneg %p127
      $region38: #{residual_block.7} parent=35 // pred_check_branch
        %256 = sbr.rel (%p254) target = $region40
      $region39: #{residual_block.7} parent=35 // pred_region
        %s257 = smul.u32 2, %s15
      $region40: #{residual_block.7} parent=35 // pred_fallthru
        _
    $region36: #{residual_block.7} parent=5 // pred_fallthru
      _
    %p258 = scmp.le.s32.totalorder 2, %s10
    // Predicated region
    $region41: #{residual_block.7} parent=5 // pred_check
      %p259 = pneg %p258
    $region42: #{residual_block.7} parent=5 // pred_check_branch
      %261 = sbr.rel (%p259) target = $region44
    $region43: #{residual_block.7} parent=5 // pred_region
      %s262 = ssub.s32 %s10, 2
      // Predicated region
      $region45: #{residual_block.7} parent=43 // pred_check
        %p263 = pneg %p133
      $region46: #{residual_block.7} parent=43 // pred_check_branch
        %265 = sbr.rel (%p263) target = $region48
      $region47: #{residual_block.7} parent=43 // pred_region
        %s266 = smul.u32 2, %s16
        %p267 = scmp.lt.s32.totalorder %s266, 3
        %s268 = scalar_select %p267, %s266, 3
        %s269 = smul.addr %s268, 8
        %s270 = scalar_lea.vmem %s4, %s269
      $region48: #{residual_block.7} parent=43 // pred_fallthru
        _
    $region44: #{residual_block.7} parent=5 // pred_fallthru
      _
  $region6: #{residual_block.7} parent=0 // loop_footer
    %s14 = sadd.s32 1, %s10
  $region7: #{residual_block.7} parent=0 // loop_footer_branch
    %9 = sbr.rel target = $region3
  $region8: #{residual_block.7} parent=0 // loop_exit
    _

</llo_original>
